<compile_context>
chip_gen: v7x
topology: tpu7x:2x2x1
jax: 0.10.0
libtpu: 0.0.40
codegen_flags: <defaults>
</compile_context>

<pallas_src>
import jax
import jax.numpy as jnp
import numpy as np
from jax.experimental import pallas as pl
from jax.experimental.pallas import tpu as pltpu

# ---- small, self-consistent hyperparameters (module default n_embd=384 scaled down;
#      kept a multiple of 128 for lane density) ----
N_EMBD = 128          # C
HIDDEN = 4 * N_EMBD   # 4C = 512
BATCH = 2             # B
SEQ = 8               # T  -> B*T = 16 rows, processed in ONE grid step


def ffn_kernel(x_ref, w1_ref, b1_ref, w2_ref, b2_ref, o_ref):
    """All rows at once: y = relu(x @ W1 + b1) @ W2 + b2   (dropout = identity)."""
    # First Linear: bf16 MXU operands, f32 accumulation.
    h = jnp.dot(x_ref[...], w1_ref[...],
                preferred_element_type=jnp.float32)          # (R, 4C) f32
    # Bias + ReLU stay in f32 on the VPU (v5e has no bf16 VPU).
    h = jnp.maximum(h + b1_ref[...], 0.0)
    # Second Linear: downcast only the MXU operand; bias add stays f32.
    y = jnp.dot(h.astype(jnp.bfloat16), w2_ref[...],
                preferred_element_type=jnp.float32)          # (R, C) f32
    o_ref[...] = (y + b2_ref[...]).astype(o_ref.dtype)


@jax.jit
def feed_forward(x, w1, b1, w2, b2):
    """x: (B,T,C) f32; w1: (C,4C) bf16; b1: (4C,) f32; w2: (4C,C) bf16; b2: (C,) f32.

    Returns (B,T,C) f32.
    """
    B, T, C = x.shape
    H = w1.shape[1]
    rows = B * T
    assert C % 128 == 0 and H % 128 == 0 and rows % 16 == 0

    x2 = x.reshape(rows, C).astype(jnp.bfloat16)   # lane-dense 2-D view, bf16 MXU operand
    b1_2 = b1.reshape(1, H).astype(jnp.float32)
    b2_2 = b2.reshape(1, C).astype(jnp.float32)

    # Advisory cost hint for XLA scheduling when embedded in a larger graph.
    cost = pl.CostEstimate(
        flops=4 * rows * C * H,                     # two matmuls: 2*rows*C*H each
        transcendentals=0,
        bytes_accessed=(rows * C * 2                # x (bf16)
                        + C * H * 2 + H * C * 2     # W1, W2 (bf16)
                        + H * 4 + C * 4             # b1, b2 (f32)
                        + rows * C * 4))            # output (f32)

    out2 = pl.pallas_call(
        ffn_kernel,
        out_shape=jax.ShapeDtypeStruct((rows, C), jnp.float32),
        grid_spec=pltpu.PrefetchScalarGridSpec(
            num_scalar_prefetch=0,
            grid=(1,),                                     # single step: no per-step overhead
            in_specs=[
                pl.BlockSpec((rows, C), lambda i: (0, 0)),  # x   (all rows, bf16)
                pl.BlockSpec((C, H), lambda i: (0, 0)),     # W1  (resident, bf16)
                pl.BlockSpec((1, H), lambda i: (0, 0)),     # b1  (f32)
                pl.BlockSpec((H, C), lambda i: (0, 0)),     # W2  (resident, bf16)
                pl.BlockSpec((1, C), lambda i: (0, 0)),     # b2  (f32)
            ],
            out_specs=pl.BlockSpec((rows, C), lambda i: (0, 0)),
        ),
        compiler_params=pltpu.CompilerParams(
            dimension_semantics=("arbitrary",)),            # one TC; no 2-TC weight duplication
        cost_estimate=cost,
    )(x2, w1, b1_2, w2, b2_2)
    return out2.reshape(B, T, C)


def ffn_reference(x, w1, b1, w2, b2):
    """Pure-JAX reference mirroring the torch forward (dropout in eval mode), f32 math."""
    h = jnp.maximum(x @ w1 + b1, 0.0)
    return h @ w2 + b2


if __name__ == "__main__":
    key = jax.random.PRNGKey(0)
    kx, k1, kb1, k2, kb2 = jax.random.split(key, 5)

    B, T, C, H = BATCH, SEQ, N_EMBD, HIDDEN

    x = jax.random.normal(kx, (B, T, C), dtype=jnp.float32)

    # deterministic nn.Linear-style init: U(-1/sqrt(fan_in), 1/sqrt(fan_in))
    lim1 = 1.0 / np.sqrt(C)
    lim2 = 1.0 / np.sqrt(H)
    w1 = jax.random.uniform(k1, (C, H), jnp.float32, -lim1, lim1)   # already x @ W layout
    b1 = jax.random.uniform(kb1, (H,), jnp.float32, -lim1, lim1)
    w2 = jax.random.uniform(k2, (H, C), jnp.float32, -lim2, lim2)
    b2 = jax.random.uniform(kb2, (C,), jnp.float32, -lim2, lim2)

    # Weights stored in bf16 (the kernel's MXU operand dtype); biases stay f32.
    w1_bf = w1.astype(jnp.bfloat16)
    w2_bf = w2.astype(jnp.bfloat16)

    out = feed_forward(x, w1_bf, b1, w2_bf, b2)
    out = jax.block_until_ready(out)

    # Reference: same (bf16-stored) weights and bf16-cast x, accumulated in f32.
    # Tolerance is relaxed vs. the pure-f32 path because the kernel also feeds the
    # second matmul a bf16 operand.
    ref = ffn_reference(x.astype(jnp.bfloat16).astype(jnp.float32),
                        w1_bf.astype(jnp.float32), b1,
                        w2_bf.astype(jnp.float32), b2)
    np.testing.assert_allclose(np.asarray(out), np.asarray(ref),
                               rtol=1e-2, atol=1e-2)

    print("KERNEL_OK")
</pallas_src>

<mosaic_0001>
module attributes {stable_mosaic.version = 11 : i64} {
  func.func @ffn_kernel(%arg0: i32, %arg1: memref<16x128xbf16, #tpu.memory_space<vmem>>, %arg2: memref<128x512xbf16, #tpu.memory_space<vmem>>, %arg3: memref<1x512xf32, #tpu.memory_space<vmem>>, %arg4: memref<512x128xbf16, #tpu.memory_space<vmem>>, %arg5: memref<1x128xf32, #tpu.memory_space<vmem>>, %arg6: memref<16x128xf32, #tpu.memory_space<vmem>>) attributes {dimension_semantics = [#tpu.dimension_semantics<arbitrary>], iteration_bounds = array<i64: 1>, scalar_prefetch = 0 : i64, scratch_operands = 0 : i64, tpu.core_type = #tpu.core_type<tc>, window_params = [{pipeline_mode = #tpu.pipeline_mode<synchronous>, transform_indices = @transform_0, window_bounds = array<i64: 16, 128>}, {pipeline_mode = #tpu.pipeline_mode<synchronous>, transform_indices = @transform_1, window_bounds = array<i64: 128, 512>}, {pipeline_mode = #tpu.pipeline_mode<synchronous>, transform_indices = @transform_2, window_bounds = array<i64: 1, 512>}, {pipeline_mode = #tpu.pipeline_mode<synchronous>, transform_indices = @transform_3, window_bounds = array<i64: 512, 128>}, {pipeline_mode = #tpu.pipeline_mode<synchronous>, transform_indices = @transform_4, window_bounds = array<i64: 1, 128>}, {pipeline_mode = #tpu.pipeline_mode<synchronous>, transform_indices = @transform_5, window_bounds = array<i64: 16, 128>}]} {
    %c0 = arith.constant 0 : index
    %c0_0 = arith.constant 0 : index
    %0 = vector.load %arg1[%c0, %c0_0] : memref<16x128xbf16, #tpu.memory_space<vmem>>, vector<16x128xbf16>
    %c0_1 = arith.constant 0 : index
    %c0_2 = arith.constant 0 : index
    %1 = vector.load %arg2[%c0_1, %c0_2] : memref<128x512xbf16, #tpu.memory_space<vmem>>, vector<128x512xbf16>
    %cst = arith.constant dense<0.000000e+00> : vector<16x512xf32>
    %2 = tpu.matmul %0, %1, %cst {dimension_numbers = #tpu.dot_dimension_numbers<[1], [0], [0], [1], [0, 0, 1, 1], [], []>} : vector<16x128xbf16>, vector<128x512xbf16>, vector<16x512xf32> -> vector<16x512xf32>
    %c0_3 = arith.constant 0 : index
    %c0_4 = arith.constant 0 : index
    %3 = vector.load %arg3[%c0_3, %c0_4] : memref<1x512xf32, #tpu.memory_space<vmem>>, vector<1x512xf32>
    %4 = vector.broadcast %3 : vector<1x512xf32> to vector<16x512xf32>
    %5 = arith.addf %2, %4 : vector<16x512xf32>
    %cst_5 = arith.constant 0.000000e+00 : f32
    %6 = vector.broadcast %cst_5 : f32 to vector<16x512xf32>
    %7 = arith.maximumf %5, %6 : vector<16x512xf32>
    %8 = arith.truncf %7 : vector<16x512xf32> to vector<16x512xbf16>
    %c0_6 = arith.constant 0 : index
    %c0_7 = arith.constant 0 : index
    %9 = vector.load %arg4[%c0_6, %c0_7] : memref<512x128xbf16, #tpu.memory_space<vmem>>, vector<512x128xbf16>
    %cst_8 = arith.constant dense<0.000000e+00> : vector<16x128xf32>
    %10 = tpu.matmul %8, %9, %cst_8 {dimension_numbers = #tpu.dot_dimension_numbers<[1], [0], [0], [1], [0, 0, 1, 1], [], []>} : vector<16x512xbf16>, vector<512x128xbf16>, vector<16x128xf32> -> vector<16x128xf32>
    %c0_9 = arith.constant 0 : index
    %c0_10 = arith.constant 0 : index
    %11 = vector.load %arg5[%c0_9, %c0_10] : memref<1x128xf32, #tpu.memory_space<vmem>>, vector<1x128xf32>
    %12 = vector.broadcast %11 : vector<1x128xf32> to vector<16x128xf32>
    %13 = arith.addf %10, %12 : vector<16x128xf32>
    %c0_11 = arith.constant 0 : index
    %c0_12 = arith.constant 0 : index
    %14 = vector.load %arg6[%c0_11, %c0_12] : memref<16x128xf32, #tpu.memory_space<vmem>>, vector<16x128xf32>
    tpu.vector_store %arg6[%c0_11, %c0_12], %13 {strides = array<i32>} : memref<16x128xf32, #tpu.memory_space<vmem>>, vector<16x128xf32>,
    return
  }
  func.func @transform_0(%arg0: i32) -> (i32, i32) {
    %c0_i32 = arith.constant 0 : i32
    %c0_i32_0 = arith.constant 0 : i32
    %c0_i32_1 = arith.constant 0 : i32
    return %c0_i32, %c0_i32_0 : i32, i32
  }
  func.func @transform_1(%arg0: i32) -> (i32, i32) {
    %c0_i32 = arith.constant 0 : i32
    %c0_i32_0 = arith.constant 0 : i32
    %c0_i32_1 = arith.constant 0 : i32
    return %c0_i32, %c0_i32_0 : i32, i32
  }
  func.func @transform_2(%arg0: i32) -> (i32, i32) {
    %c0_i32 = arith.constant 0 : i32
    %c0_i32_0 = arith.constant 0 : i32
    %c0_i32_1 = arith.constant 0 : i32
    return %c0_i32, %c0_i32_0 : i32, i32
  }
  func.func @transform_3(%arg0: i32) -> (i32, i32) {
    %c0_i32 = arith.constant 0 : i32
    %c0_i32_0 = arith.constant 0 : i32
    %c0_i32_1 = arith.constant 0 : i32
    return %c0_i32, %c0_i32_0 : i32, i32
  }
  func.func @transform_4(%arg0: i32) -> (i32, i32) {
    %c0_i32 = arith.constant 0 : i32
    %c0_i32_0 = arith.constant 0 : i32
    %c0_i32_1 = arith.constant 0 : i32
    return %c0_i32, %c0_i32_0 : i32, i32
  }
  func.func @transform_5(%arg0: i32) -> (i32, i32) {
    %c0_i32 = arith.constant 0 : i32
    %c0_i32_0 = arith.constant 0 : i32
    %c0_i32_1 = arith.constant 0 : i32
    return %c0_i32, %c0_i32_0 : i32, i32
  }
}

</mosaic_0001>

<llo_original>
// kernel: feed_forward.1
$region0: #{feed_forward.1}
  #allocation0 [shape = 'u32[]', space=smem, size = 0x4, offset = 0x4, fixed_abs, tag = 'smem constant byte address 0x4 - core index']
  #allocation1 [shape = 'u32[144,128]{1,0:T(1,128)}', space=vmem, size = 0x12000, scoped, tag = 'internal scratch']
  %s0 = inlined_call_operand.vmem [shape: bf16[16,128], index: 0, kind: input, shape index: {}]
  %s1 = inlined_call_operand.hbm [shape: bf16[128,512], index: 1, kind: input, shape index: {}]
  %s2 = inlined_call_operand.vmem [shape: f32[1,512], index: 2, kind: input, shape index: {}]
  %s3 = inlined_call_operand.hbm [shape: bf16[512,128], index: 3, kind: input, shape index: {}]
  %s4 = inlined_call_operand.vmem [shape: f32[1,128], index: 4, kind: input, shape index: {}]
  %s5 = inlined_call_operand.hbm [shape: f32[16,128], index: 5, kind: output, shape index: {}]
  %s6 = sld [smem:[#allocation0]]
  $region38: #{feed_forward.1} parent=0
    _
  %s8 = ssub.s32 1, %s6
  %s9 = scalar_select 0, %s8, %s6
  $region1: #{feed_forward.1} parent=0
    #allocation2 [shape = 'u8[131072]{0}', space=vmem, size = 0x20000, scoped, tag = 'input window, operand 1, single buffered']
    #allocation3 [shape = 's32[1]{0}', space=sflag, size = 0x4, scoped, tag = 'scoped memory for feed_forward.1']
    #allocation4 [shape = 's32[1]{0}', space=sflag, size = 0x4, scoped, tag = 'scoped memory for feed_forward.1']
    #allocation5 [shape = 'u8[131072]{0}', space=vmem, size = 0x20000, scoped, tag = 'input window, operand 3, single buffered']
    #allocation6 [shape = 's32[1]{0}', space=sflag, size = 0x4, scoped, tag = 'scoped memory for feed_forward.1']
    #allocation7 [shape = 'u8[8192]{0}', space=vmem, size = 0x2000, scoped, tag = 'output window, operand 0, single buffered']
    %10 = vsyncpa [#allocation3], 0
    %11 = vsyncpa [#allocation6], 0
    %12 = vsyncpa [#allocation4], 0
    // Predicated region
    $region2: #{feed_forward.1} parent=1 // pred_check
      _
    $region3: #{feed_forward.1} parent=1 // pred_check_branch
      %14 = sbr.rel (0) target = $region5
    $region4: #{feed_forward.1} parent=1 // pred_region
      _
    $region5: #{feed_forward.1} parent=1 // pred_fallthru
      _
    // Predicated region
    $region6: #{feed_forward.1} parent=1 // pred_check
      _
    $region7: #{feed_forward.1} parent=1 // pred_check_branch
      %16 = sbr.rel (0) target = $region9
    $region8: #{feed_forward.1} parent=1 // pred_region
      %s18 = ssub.s32 4096, 4096
      %19 = vsyncadd [#allocation3], %s18
      %s20 = sshll.u32 [#allocation2], 4
      %s21 = int_to_ptr.vmem [resolvable:$true] %s20
      %26 = dma.hbm_to_vmem [thread:$0]  %s1, 4096, %s21, [#allocation3], 256, 256, 16
    $region9: #{feed_forward.1} parent=1 // pred_fallthru
      _
    // Predicated region
    $region10: #{feed_forward.1} parent=1 // pred_check
      _
    $region11: #{feed_forward.1} parent=1 // pred_check_branch
      %28 = sbr.rel (0) target = $region13
    $region12: #{feed_forward.1} parent=1 // pred_region
      _
    $region13: #{feed_forward.1} parent=1 // pred_fallthru
      _
    // Predicated region
    $region14: #{feed_forward.1} parent=1 // pred_check
      _
    $region15: #{feed_forward.1} parent=1 // pred_check_branch
      %30 = sbr.rel (0) target = $region17
    $region16: #{feed_forward.1} parent=1 // pred_region
      %s32 = ssub.s32 4096, 4096
      %33 = vsyncadd [#allocation6], %s32
      %s34 = sshll.u32 [#allocation5], 4
      %s35 = int_to_ptr.vmem [resolvable:$true] %s34
      %40 = dma.hbm_to_vmem [thread:$0]  %s3, 4096, %s35, [#allocation6], 64, 64, 4
    $region17: #{feed_forward.1} parent=1 // pred_fallthru
      _
    // Predicated region
    $region18: #{feed_forward.1} parent=1 // pred_check
      _
    $region19: #{feed_forward.1} parent=1 // pred_check_branch
      %42 = sbr.rel (0) target = $region21
    $region20: #{feed_forward.1} parent=1 // pred_region
      _
    $region21: #{feed_forward.1} parent=1 // pred_fallthru
      _
    // Predicated region
    $region22: #{feed_forward.1} parent=1 // pred_check
      _
    $region23: #{feed_forward.1} parent=1 // pred_check_branch
      %44 = sbr.rel (0) target = $region25
    $region24: #{feed_forward.1} parent=1 // pred_region
      %45 = dma.done [#allocation3], 4096
    $region25: #{feed_forward.1} parent=1 // pred_fallthru
      _
    // Predicated region
    $region26: #{feed_forward.1} parent=1 // pred_check
      _
    $region27: #{feed_forward.1} parent=1 // pred_check_branch
      %47 = sbr.rel (0) target = $region29
    $region28: #{feed_forward.1} parent=1 // pred_region
      %48 = dma.done [#allocation6], 4096
    $region29: #{feed_forward.1} parent=1 // pred_fallthru
      _
    %v50 = vld [vmem:[%s0] sm:$0xf]
    %v51 = vld [vmem:[%s0 + $0x4] sm:$0xf]
    %v52 = vld [vmem:[#allocation2] sm:$0xff]
    %v53 = vld [vmem:[#allocation2 + $0x8] sm:$0xff]
    %v54 = vld [vmem:[#allocation2 + $0x10] sm:$0xff]
    %v55 = vld [vmem:[#allocation2 + $0x18] sm:$0xff]
    %v56 = vld [vmem:[#allocation2 + $0x20] sm:$0xff]
    %v57 = vld [vmem:[#allocation2 + $0x28] sm:$0xff]
    %v58 = vld [vmem:[#allocation2 + $0x30] sm:$0xff]
    %v59 = vld [vmem:[#allocation2 + $0x38] sm:$0xff]
    %v60 = vld [vmem:[#allocation2 + $0x40] sm:$0xff]
    %v61 = vld [vmem:[#allocation2 + $0x48] sm:$0xff]
    %v62 = vld [vmem:[#allocation2 + $0x50] sm:$0xff]
    %v63 = vld [vmem:[#allocation2 + $0x58] sm:$0xff]
    %v64 = vld [vmem:[#allocation2 + $0x60] sm:$0xff]
    %v65 = vld [vmem:[#allocation2 + $0x68] sm:$0xff]
    %v66 = vld [vmem:[#allocation2 + $0x70] sm:$0xff]
    %v67 = vld [vmem:[#allocation2 + $0x78] sm:$0xff]
    %v68 = vld [vmem:[#allocation2 + $0x80] sm:$0xff]
    %v69 = vld [vmem:[#allocation2 + $0x88] sm:$0xff]
    %v70 = vld [vmem:[#allocation2 + $0x90] sm:$0xff]
    %v71 = vld [vmem:[#allocation2 + $0x98] sm:$0xff]
    %v72 = vld [vmem:[#allocation2 + $0xa0] sm:$0xff]
    %v73 = vld [vmem:[#allocation2 + $0xa8] sm:$0xff]
    %v74 = vld [vmem:[#allocation2 + $0xb0] sm:$0xff]
    %v75 = vld [vmem:[#allocation2 + $0xb8] sm:$0xff]
    %v76 = vld [vmem:[#allocation2 + $0xc0] sm:$0xff]
    %v77 = vld [vmem:[#allocation2 + $0xc8] sm:$0xff]
    %v78 = vld [vmem:[#allocation2 + $0xd0] sm:$0xff]
    %v79 = vld [vmem:[#allocation2 + $0xd8] sm:$0xff]
    %v80 = vld [vmem:[#allocation2 + $0xe0] sm:$0xff]
    %v81 = vld [vmem:[#allocation2 + $0xe8] sm:$0xff]
    %v82 = vld [vmem:[#allocation2 + $0xf0] sm:$0xff]
    %v83 = vld [vmem:[#allocation2 + $0xf8] sm:$0xff]
    %v84 = vld [vmem:[%s2] sm:$0xf]
    %v86 = vlaneseq
    %v87 = vshrl.u32 %v86, 7
    %v88 = vsub.s32 0, %v87
    %v89 = vrot.slane %v84, %v88
    %v90 = vlaneseq
    %v91 = vshrl.u32 %v90, 7
    %v92 = vsub.s32 1, %v91
    %v93 = vrot.slane %v84, %v92
    %v94 = vlaneseq
    %v95 = vshrl.u32 %v94, 7
    %v96 = vsub.s32 2, %v95
    %v97 = vrot.slane %v84, %v96
    %v98 = vlaneseq
    %v99 = vshrl.u32 %v98, 7
    %v100 = vsub.s32 3, %v99
    %v101 = vrot.slane %v84, %v100
    %v108 = vunpack.c.l.b16 %v50
    %v109 = vunpack.c.l.b16 %v51
    %v110 = vpack.c.b16 %v109, %v108
    %v144 = vunpack.c.l.b16 %v52
    %v145 = vunpack.c.h.b16 %v52
    %v146 = vunpack.c.l.b16 %v53
    %v147 = vunpack.c.h.b16 %v53
    %v148 = vunpack.c.l.b16 %v54
    %v149 = vunpack.c.h.b16 %v54
    %v150 = vunpack.c.l.b16 %v55
    %v151 = vunpack.c.h.b16 %v55
    %v152 = vunpack.c.l.b16 %v56
    %v153 = vunpack.c.h.b16 %v56
    %v154 = vunpack.c.l.b16 %v57
    %v155 = vunpack.c.h.b16 %v57
    %v156 = vunpack.c.l.b16 %v58
    %v157 = vunpack.c.h.b16 %v58
    %v158 = vunpack.c.l.b16 %v59
    %v159 = vunpack.c.h.b16 %v59
    %v160 = vunpack.c.l.b16 %v60
    %v161 = vunpack.c.h.b16 %v60
    %v162 = vunpack.c.l.b16 %v61
    %v163 = vunpack.c.h.b16 %v61
    %v164 = vunpack.c.l.b16 %v62
    %v165 = vunpack.c.h.b16 %v62
    %v166 = vunpack.c.l.b16 %v63
    %v167 = vunpack.c.h.b16 %v63
    %v168 = vunpack.c.l.b16 %v64
    %v169 = vunpack.c.h.b16 %v64
    %v170 = vunpack.c.l.b16 %v65
    %v171 = vunpack.c.h.b16 %v65
    %v172 = vunpack.c.l.b16 %v66
    %v173 = vunpack.c.h.b16 %v66
    %v174 = vunpack.c.l.b16 %v67
    %v175 = vunpack.c.h.b16 %v67
    %v176 = vunpack.c.l.b16 %v68
    %v177 = vunpack.c.h.b16 %v68
    %v178 = vunpack.c.l.b16 %v69
    %v179 = vunpack.c.h.b16 %v69
    %v180 = vunpack.c.l.b16 %v70
    %v181 = vunpack.c.h.b16 %v70
    %v182 = vunpack.c.l.b16 %v71
    %v183 = vunpack.c.h.b16 %v71
    %v184 = vunpack.c.l.b16 %v72
    %v185 = vunpack.c.h.b16 %v72
    %v186 = vunpack.c.l.b16 %v73
    %v187 = vunpack.c.h.b16 %v73
    %v188 = vunpack.c.l.b16 %v74
    %v189 = vunpack.c.h.b16 %v74
    %v190 = vunpack.c.l.b16 %v75
    %v191 = vunpack.c.h.b16 %v75
    %v192 = vunpack.c.l.b16 %v76
    %v193 = vunpack.c.h.b16 %v76
    %v194 = vunpack.c.l.b16 %v77
    %v195 = vunpack.c.h.b16 %v77
    %v196 = vunpack.c.l.b16 %v78
    %v197 = vunpack.c.h.b16 %v78
    %v198 = vunpack.c.l.b16 %v79
    %v199 = vunpack.c.h.b16 %v79
    %v200 = vunpack.c.l.b16 %v80
    %v201 = vunpack.c.h.b16 %v80
    %v202 = vunpack.c.l.b16 %v81
    %v203 = vunpack.c.h.b16 %v81
    %v204 = vunpack.c.l.b16 %v82
    %v205 = vunpack.c.h.b16 %v82
    %v206 = vunpack.c.l.b16 %v83
    %v207 = vunpack.c.h.b16 %v83
    %v208 = vpack.c.b16 %v148, %v144
    %v209 = vpack.c.b16 %v149, %v145
    %v210 = vpack.c.b16 %v150, %v146
    %v211 = vpack.c.b16 %v151, %v147
    %v212 = vpack.c.b16 %v156, %v152
    %v213 = vpack.c.b16 %v157, %v153
    %v214 = vpack.c.b16 %v158, %v154
    %v215 = vpack.c.b16 %v159, %v155
    %v216 = vpack.c.b16 %v164, %v160
    %v217 = vpack.c.b16 %v165, %v161
    %v218 = vpack.c.b16 %v166, %v162
    %v219 = vpack.c.b16 %v167, %v163
    %v220 = vpack.c.b16 %v172, %v168
    %v221 = vpack.c.b16 %v173, %v169
    %v222 = vpack.c.b16 %v174, %v170
    %v223 = vpack.c.b16 %v175, %v171
    %v224 = vpack.c.b16 %v180, %v176
    %v225 = vpack.c.b16 %v181, %v177
    %v226 = vpack.c.b16 %v182, %v178
    %v227 = vpack.c.b16 %v183, %v179
    %v228 = vpack.c.b16 %v188, %v184
    %v229 = vpack.c.b16 %v189, %v185
    %v230 = vpack.c.b16 %v190, %v186
    %v231 = vpack.c.b16 %v191, %v187
    %v232 = vpack.c.b16 %v196, %v192
    %v233 = vpack.c.b16 %v197, %v193
    %v234 = vpack.c.b16 %v198, %v194
    %v235 = vpack.c.b16 %v199, %v195
    %v236 = vpack.c.b16 %v204, %v200
    %v237 = vpack.c.b16 %v205, %v201
    %v238 = vpack.c.b16 %v206, %v202
    %v239 = vpack.c.b16 %v207, %v203
    %272 = vmatprep.subr.bf16.mxu0 %v209
    %273 = vmatpush1.bf16.msra.mxu0 %v208
    %274 = vmatprep.subr.bf16.mxu0 %v213
    %275 = vmatpush1.bf16.msra.mxu0 %v212
    %276 = vmatprep.subr.bf16.mxu0 %v217
    %277 = vmatpush1.bf16.msra.mxu0 %v216
    %278 = vmatprep.subr.bf16.mxu0 %v221
    %279 = vmatpush1.bf16.msra.mxu0 %v220
    %280 = vmatprep.subr.bf16.mxu0 %v225
    %281 = vmatpush1.bf16.msra.mxu0 %v224
    %282 = vmatprep.subr.bf16.mxu0 %v229
    %283 = vmatpush1.bf16.msra.mxu0 %v228
    %284 = vmatprep.subr.bf16.mxu0 %v233
    %285 = vmatpush1.bf16.msra.mxu0 %v232
    %286 = vmatprep.subr.bf16.mxu0 %v237
    %287 = vmatpush1.bf16.msra.mxu0 %v236
    %288 = vmatprep.subr.bf16.mxu0 0
    %289 = vmatpush1.bf16.msra.mxu0 0
    %290 = vmatprep.subr.bf16.mxu0 0
    %291 = vmatpush1.bf16.msra.mxu0 0
    %292 = vmatprep.subr.bf16.mxu0 0
    %293 = vmatpush1.bf16.msra.mxu0 0
    %294 = vmatprep.subr.bf16.mxu0 0
    %295 = vmatpush1.bf16.msra.mxu0 0
    %296 = vmatprep.subr.bf16.mxu0 0
    %297 = vmatpush1.bf16.msra.mxu0 0
    %298 = vmatprep.subr.bf16.mxu0 0
    %299 = vmatpush1.bf16.msra.mxu0 0
    %300 = vmatprep.subr.bf16.mxu0 0
    %301 = vmatpush1.bf16.msra.mxu0 0
    %302 = vmatprep.subr.bf16.mxu0 0
    %303 = vmatpush1.bf16.msra.mxu0 0
    %304 = vmatprep.mubr.bf16.mxu0 0
    %305 = vmatmul.mubr.bf16.gmra.mrb[0].mxu0 %v110
    %v306 = vpop.f32.mrb[0].mxu0
    %v307 = vadd.f32 %v89, %v306
    %v308 = vpop.f32.mrb[0].mxu0
    %v309 = vadd.f32 %v93, %v308
    %v310 = vpop.f32.mrb[0].mxu0
    %v311 = vadd.f32 %v89, %v310
    %v312 = vpop.f32.mrb[0].mxu0
    %v313 = vadd.f32 %v93, %v312
    %314 = vdwg.mxu0
    %315 = vmatprep.subr.bf16.mxu0 %v211
    %316 = vmatpush1.bf16.msra.mxu0 %v210
    %317 = vmatprep.subr.bf16.mxu0 %v215
    %318 = vmatpush1.bf16.msra.mxu0 %v214
    %319 = vmatprep.subr.bf16.mxu0 %v219
    %320 = vmatpush1.bf16.msra.mxu0 %v218
    %321 = vmatprep.subr.bf16.mxu0 %v223
    %322 = vmatpush1.bf16.msra.mxu0 %v222
    %323 = vmatprep.subr.bf16.mxu0 %v227
    %324 = vmatpush1.bf16.msra.mxu0 %v226
    %325 = vmatprep.subr.bf16.mxu0 %v231
    %326 = vmatpush1.bf16.msra.mxu0 %v230
    %327 = vmatprep.subr.bf16.mxu0 %v235
    %328 = vmatpush1.bf16.msra.mxu0 %v234
    %329 = vmatprep.subr.bf16.mxu0 %v239
    %330 = vmatpush1.bf16.msra.mxu0 %v238
    %331 = vmatprep.subr.bf16.mxu0 0
    %332 = vmatpush1.bf16.msra.mxu0 0
    %333 = vmatprep.subr.bf16.mxu0 0
    %334 = vmatpush1.bf16.msra.mxu0 0
    %335 = vmatprep.subr.bf16.mxu0 0
    %336 = vmatpush1.bf16.msra.mxu0 0
    %337 = vmatprep.subr.bf16.mxu0 0
    %338 = vmatpush1.bf16.msra.mxu0 0
    %339 = vmatprep.subr.bf16.mxu0 0
    %340 = vmatpush1.bf16.msra.mxu0 0
    %341 = vmatprep.subr.bf16.mxu0 0
    %342 = vmatpush1.bf16.msra.mxu0 0
    %343 = vmatprep.subr.bf16.mxu0 0
    %344 = vmatpush1.bf16.msra.mxu0 0
    %345 = vmatprep.subr.bf16.mxu0 0
    %346 = vmatpush1.bf16.msra.mxu0 0
    %347 = vmatprep.mubr.bf16.mxu0 0
    %348 = vmatmul.mubr.bf16.gmra.mrb[0].mxu0 %v110
    %v349 = vpop.f32.mrb[0].mxu0
    %v350 = vadd.f32 %v97, %v349
    %v351 = vpop.f32.mrb[0].mxu0
    %v352 = vadd.f32 %v101, %v351
    %v353 = vpop.f32.mrb[0].mxu0
    %v354 = vadd.f32 %v97, %v353
    %v355 = vpop.f32.mrb[0].mxu0
    %v356 = vadd.f32 %v101, %v355
    %357 = vdwg.mxu0
    %v358 = vmax.f32 %v307, 0.0
    %v359 = vmax.f32 %v309, 0.0
    %v360 = vmax.f32 %v350, 0.0
    %v361 = vmax.f32 %v352, 0.0
    %v362 = vmax.f32 %v311, 0.0
    %v363 = vmax.f32 %v313, 0.0
    %v364 = vmax.f32 %v354, 0.0
    %v365 = vmax.f32 %v356, 0.0
    %v366 = vpack.c.bf16 %v362, %v358
    %v367 = vpack.c.bf16 %v363, %v359
    %v368 = vpack.c.bf16 %v364, %v360
    %v369 = vpack.c.bf16 %v365, %v361
    %v370 = vld [vmem:[#allocation5] sm:$0xf]
    %v371 = vld [vmem:[#allocation5 + $0x4] sm:$0xf]
    %v372 = vld [vmem:[#allocation5 + $0x8] sm:$0xf]
    %v373 = vld [vmem:[#allocation5 + $0xc] sm:$0xf]
    %v374 = vld [vmem:[#allocation5 + $0x10] sm:$0xf]
    %v375 = vld [vmem:[#allocation5 + $0x14] sm:$0xf]
    %v376 = vld [vmem:[#allocation5 + $0x18] sm:$0xf]
    %v377 = vld [vmem:[#allocation5 + $0x1c] sm:$0xf]
    %v378 = vld [vmem:[#allocation5 + $0x20] sm:$0xf]
    %v379 = vld [vmem:[#allocation5 + $0x24] sm:$0xf]
    %v380 = vld [vmem:[#allocation5 + $0x28] sm:$0xf]
    %v381 = vld [vmem:[#allocation5 + $0x2c] sm:$0xf]
    %v382 = vld [vmem:[#allocation5 + $0x30] sm:$0xf]
    %v383 = vld [vmem:[#allocation5 + $0x34] sm:$0xf]
    %v384 = vld [vmem:[#allocation5 + $0x38] sm:$0xf]
    %v385 = vld [vmem:[#allocation5 + $0x3c] sm:$0xf]
    %v386 = vld [vmem:[#allocation5 + $0x40] sm:$0xf]
    %v387 = vld [vmem:[#allocation5 + $0x44] sm:$0xf]
    %v388 = vld [vmem:[#allocation5 + $0x48] sm:$0xf]
    %v389 = vld [vmem:[#allocation5 + $0x4c] sm:$0xf]
    %v390 = vld [vmem:[#allocation5 + $0x50] sm:$0xf]
    %v391 = vld [vmem:[#allocation5 + $0x54] sm:$0xf]
    %v392 = vld [vmem:[#allocation5 + $0x58] sm:$0xf]
    %v393 = vld [vmem:[#allocation5 + $0x5c] sm:$0xf]
    %v394 = vld [vmem:[#allocation5 + $0x60] sm:$0xf]
    %v395 = vld [vmem:[#allocation5 + $0x64] sm:$0xf]
    %v396 = vld [vmem:[#allocation5 + $0x68] sm:$0xf]
    %v397 = vld [vmem:[#allocation5 + $0x6c] sm:$0xf]
    %v398 = vld [vmem:[#allocation5 + $0x70] sm:$0xf]
    %v399 = vld [vmem:[#allocation5 + $0x74] sm:$0xf]
    %v400 = vld [vmem:[#allocation5 + $0x78] sm:$0xf]
    %v401 = vld [vmem:[#allocation5 + $0x7c] sm:$0xf]
    %v402 = vld [vmem:[#allocation5 + $0x80] sm:$0xf]
    %v403 = vld [vmem:[#allocation5 + $0x84] sm:$0xf]
    %v404 = vld [vmem:[#allocation5 + $0x88] sm:$0xf]
    %v405 = vld [vmem:[#allocation5 + $0x8c] sm:$0xf]
    %v406 = vld [vmem:[#allocation5 + $0x90] sm:$0xf]
    %v407 = vld [vmem:[#allocation5 + $0x94] sm:$0xf]
    %v408 = vld [vmem:[#allocation5 + $0x98] sm:$0xf]
    %v409 = vld [vmem:[#allocation5 + $0x9c] sm:$0xf]
    %v410 = vld [vmem:[#allocation5 + $0xa0] sm:$0xf]
    %v411 = vld [vmem:[#allocation5 + $0xa4] sm:$0xf]
    %v412 = vld [vmem:[#allocation5 + $0xa8] sm:$0xf]
    %v413 = vld [vmem:[#allocation5 + $0xac] sm:$0xf]
    %v414 = vld [vmem:[#allocation5 + $0xb0] sm:$0xf]
    %v415 = vld [vmem:[#allocation5 + $0xb4] sm:$0xf]
    %v416 = vld [vmem:[#allocation5 + $0xb8] sm:$0xf]
    %v417 = vld [vmem:[#allocation5 + $0xbc] sm:$0xf]
    %v418 = vld [vmem:[#allocation5 + $0xc0] sm:$0xf]
    %v419 = vld [vmem:[#allocation5 + $0xc4] sm:$0xf]
    %v420 = vld [vmem:[#allocation5 + $0xc8] sm:$0xf]
    %v421 = vld [vmem:[#allocation5 + $0xcc] sm:$0xf]
    %v422 = vld [vmem:[#allocation5 + $0xd0] sm:$0xf]
    %v423 = vld [vmem:[#allocation5 + $0xd4] sm:$0xf]
    %v424 = vld [vmem:[#allocation5 + $0xd8] sm:$0xf]
    %v425 = vld [vmem:[#allocation5 + $0xdc] sm:$0xf]
    %v426 = vld [vmem:[#allocation5 + $0xe0] sm:$0xf]
    %v427 = vld [vmem:[#allocation5 + $0xe4] sm:$0xf]
    %v428 = vld [vmem:[#allocation5 + $0xe8] sm:$0xf]
    %v429 = vld [vmem:[#allocation5 + $0xec] sm:$0xf]
    %v430 = vld [vmem:[#allocation5 + $0xf0] sm:$0xf]
    %v431 = vld [vmem:[#allocation5 + $0xf4] sm:$0xf]
    %v432 = vld [vmem:[#allocation5 + $0xf8] sm:$0xf]
    %v433 = vld [vmem:[#allocation5 + $0xfc] sm:$0xf]
    %v434 = vld [vmem:[%s4] sm:$0x1]
    %v436 = vlaneseq
    %v437 = vshrl.u32 %v436, 7
    %v438 = vsub.s32 0, %v437
    %v439 = vrot.slane %v434, %v438
    %v505 = vunpack.c.l.b16 %v370
    %v506 = vunpack.c.l.b16 %v371
    %v507 = vunpack.c.l.b16 %v372
    %v508 = vunpack.c.l.b16 %v373
    %v509 = vunpack.c.l.b16 %v374
    %v510 = vunpack.c.l.b16 %v375
    %v511 = vunpack.c.l.b16 %v376
    %v512 = vunpack.c.l.b16 %v377
    %v513 = vunpack.c.l.b16 %v378
    %v514 = vunpack.c.l.b16 %v379
    %v515 = vunpack.c.l.b16 %v380
    %v516 = vunpack.c.l.b16 %v381
    %v517 = vunpack.c.l.b16 %v382
    %v518 = vunpack.c.l.b16 %v383
    %v519 = vunpack.c.l.b16 %v384
    %v520 = vunpack.c.l.b16 %v385
    %v521 = vunpack.c.l.b16 %v386
    %v522 = vunpack.c.l.b16 %v387
    %v523 = vunpack.c.l.b16 %v388
    %v524 = vunpack.c.l.b16 %v389
    %v525 = vunpack.c.l.b16 %v390
    %v526 = vunpack.c.l.b16 %v391
    %v527 = vunpack.c.l.b16 %v392
    %v528 = vunpack.c.l.b16 %v393
    %v529 = vunpack.c.l.b16 %v394
    %v530 = vunpack.c.l.b16 %v395
    %v531 = vunpack.c.l.b16 %v396
    %v532 = vunpack.c.l.b16 %v397
    %v533 = vunpack.c.l.b16 %v398
    %v534 = vunpack.c.l.b16 %v399
    %v535 = vunpack.c.l.b16 %v400
    %v536 = vunpack.c.l.b16 %v401
    %v537 = vunpack.c.l.b16 %v402
    %v538 = vunpack.c.l.b16 %v403
    %v539 = vunpack.c.l.b16 %v404
    %v540 = vunpack.c.l.b16 %v405
    %v541 = vunpack.c.l.b16 %v406
    %v542 = vunpack.c.l.b16 %v407
    %v543 = vunpack.c.l.b16 %v408
    %v544 = vunpack.c.l.b16 %v409
    %v545 = vunpack.c.l.b16 %v410
    %v546 = vunpack.c.l.b16 %v411
    %v547 = vunpack.c.l.b16 %v412
    %v548 = vunpack.c.l.b16 %v413
    %v549 = vunpack.c.l.b16 %v414
    %v550 = vunpack.c.l.b16 %v415
    %v551 = vunpack.c.l.b16 %v416
    %v552 = vunpack.c.l.b16 %v417
    %v553 = vunpack.c.l.b16 %v418
    %v554 = vunpack.c.l.b16 %v419
    %v555 = vunpack.c.l.b16 %v420
    %v556 = vunpack.c.l.b16 %v421
    %v557 = vunpack.c.l.b16 %v422
    %v558 = vunpack.c.l.b16 %v423
    %v559 = vunpack.c.l.b16 %v424
    %v560 = vunpack.c.l.b16 %v425
    %v561 = vunpack.c.l.b16 %v426
    %v562 = vunpack.c.l.b16 %v427
    %v563 = vunpack.c.l.b16 %v428
    %v564 = vunpack.c.l.b16 %v429
    %v565 = vunpack.c.l.b16 %v430
    %v566 = vunpack.c.l.b16 %v431
    %v567 = vunpack.c.l.b16 %v432
    %v568 = vunpack.c.l.b16 %v433
    %v569 = vpack.c.b16 %v506, %v505
    %v570 = vpack.c.b16 %v508, %v507
    %v571 = vpack.c.b16 %v510, %v509
    %v572 = vpack.c.b16 %v512, %v511
    %v573 = vpack.c.b16 %v514, %v513
    %v574 = vpack.c.b16 %v516, %v515
    %v575 = vpack.c.b16 %v518, %v517
    %v576 = vpack.c.b16 %v520, %v519
    %v577 = vpack.c.b16 %v522, %v521
    %v578 = vpack.c.b16 %v524, %v523
    %v579 = vpack.c.b16 %v526, %v525
    %v580 = vpack.c.b16 %v528, %v527
    %v581 = vpack.c.b16 %v530, %v529
    %v582 = vpack.c.b16 %v532, %v531
    %v583 = vpack.c.b16 %v534, %v533
    %v584 = vpack.c.b16 %v536, %v535
    %v585 = vpack.c.b16 %v538, %v537
    %v586 = vpack.c.b16 %v540, %v539
    %v587 = vpack.c.b16 %v542, %v541
    %v588 = vpack.c.b16 %v544, %v543
    %v589 = vpack.c.b16 %v546, %v545
    %v590 = vpack.c.b16 %v548, %v547
    %v591 = vpack.c.b16 %v550, %v549
    %v592 = vpack.c.b16 %v552, %v551
    %v593 = vpack.c.b16 %v554, %v553
    %v594 = vpack.c.b16 %v556, %v555
    %v595 = vpack.c.b16 %v558, %v557
    %v596 = vpack.c.b16 %v560, %v559
    %v597 = vpack.c.b16 %v562, %v561
    %v598 = vpack.c.b16 %v564, %v563
    %v599 = vpack.c.b16 %v566, %v565
    %v600 = vpack.c.b16 %v568, %v567
    %633 = vmatprep.subr.bf16.mxu0 0
    %634 = vmatpush1.bf16.msra.mxu0 %v569
    %635 = vmatprep.subr.bf16.mxu0 0
    %636 = vmatpush1.bf16.msra.mxu0 %v570
    %637 = vmatprep.subr.bf16.mxu0 0
    %638 = vmatpush1.bf16.msra.mxu0 %v571
    %639 = vmatprep.subr.bf16.mxu0 0
    %640 = vmatpush1.bf16.msra.mxu0 %v572
    %641 = vmatprep.subr.bf16.mxu0 0
    %642 = vmatpush1.bf16.msra.mxu0 %v573
    %643 = vmatprep.subr.bf16.mxu0 0
    %644 = vmatpush1.bf16.msra.mxu0 %v574
    %645 = vmatprep.subr.bf16.mxu0 0
    %646 = vmatpush1.bf16.msra.mxu0 %v575
    %647 = vmatprep.subr.bf16.mxu0 0
    %648 = vmatpush1.bf16.msra.mxu0 %v576
    %649 = vmatprep.subr.bf16.mxu0 0
    %650 = vmatpush1.bf16.msra.mxu0 %v577
    %651 = vmatprep.subr.bf16.mxu0 0
    %652 = vmatpush1.bf16.msra.mxu0 %v578
    %653 = vmatprep.subr.bf16.mxu0 0
    %654 = vmatpush1.bf16.msra.mxu0 %v579
    %655 = vmatprep.subr.bf16.mxu0 0
    %656 = vmatpush1.bf16.msra.mxu0 %v580
    %657 = vmatprep.subr.bf16.mxu0 0
    %658 = vmatpush1.bf16.msra.mxu0 %v581
    %659 = vmatprep.subr.bf16.mxu0 0
    %660 = vmatpush1.bf16.msra.mxu0 %v582
    %661 = vmatprep.subr.bf16.mxu0 0
    %662 = vmatpush1.bf16.msra.mxu0 %v583
    %663 = vmatprep.subr.bf16.mxu0 0
    %664 = vmatpush1.bf16.msra.mxu0 %v584
    %665 = vmatprep.mubr.bf16.mxu0 %v367
    %666 = vmatmul.mubr.bf16.gmra.mrb[0].mxu0 %v366
    %v667 = vpop.f32.mrb[0].mxu0
    %v668 = vadd.f32 %v439, %v667
    %v669 = vpop.f32.mrb[0].mxu0
    %v670 = vpop.f32.mrb[0].mxu0
    %v671 = vadd.f32 %v439, %v670
    %v672 = vpop.f32.mrb[0].mxu0
    %673 = vdwg.mxu0
    %674 = vmatprep.subr.bf16.mxu0 0
    %675 = vmatpush1.bf16.msra.mxu0 %v585
    %676 = vmatprep.subr.bf16.mxu0 0
    %677 = vmatpush1.bf16.msra.mxu0 %v586
    %678 = vmatprep.subr.bf16.mxu0 0
    %679 = vmatpush1.bf16.msra.mxu0 %v587
    %680 = vmatprep.subr.bf16.mxu0 0
    %681 = vmatpush1.bf16.msra.mxu0 %v588
    %682 = vmatprep.subr.bf16.mxu0 0
    %683 = vmatpush1.bf16.msra.mxu0 %v589
    %684 = vmatprep.subr.bf16.mxu0 0
    %685 = vmatpush1.bf16.msra.mxu0 %v590
    %686 = vmatprep.subr.bf16.mxu0 0
    %687 = vmatpush1.bf16.msra.mxu0 %v591
    %688 = vmatprep.subr.bf16.mxu0 0
    %689 = vmatpush1.bf16.msra.mxu0 %v592
    %690 = vmatprep.subr.bf16.mxu0 0
    %691 = vmatpush1.bf16.msra.mxu0 %v593
    %692 = vmatprep.subr.bf16.mxu0 0
    %693 = vmatpush1.bf16.msra.mxu0 %v594
    %694 = vmatprep.subr.bf16.mxu0 0
    %695 = vmatpush1.bf16.msra.mxu0 %v595
    %696 = vmatprep.subr.bf16.mxu0 0
    %697 = vmatpush1.bf16.msra.mxu0 %v596
    %698 = vmatprep.subr.bf16.mxu0 0
    %699 = vmatpush1.bf16.msra.mxu0 %v597
    %700 = vmatprep.subr.bf16.mxu0 0
    %701 = vmatpush1.bf16.msra.mxu0 %v598
    %702 = vmatprep.subr.bf16.mxu0 0
    %703 = vmatpush1.bf16.msra.mxu0 %v599
    %704 = vmatprep.subr.bf16.mxu0 0
    %705 = vmatpush1.bf16.msra.mxu0 %v600
    %706 = vmatprep.mubr.bf16.mxu0 %v369
    %707 = vmatmul.mubr.bf16.gmra.mrb[0].mxu0 %v368
    %v708 = vpop.f32.mrb[0].mxu0
    %v709 = vadd.f32 %v668, %v708
    %v710 = vpop.f32.mrb[0].mxu0
    %v711 = vpop.f32.mrb[0].mxu0
    %v712 = vadd.f32 %v671, %v711
    %v713 = vpop.f32.mrb[0].mxu0
    %714 = vdwg.mxu0
    %715 = vst [vmem:[#allocation7] sm:$0xff] %v709
    %716 = vst [vmem:[#allocation7 + $0x8] sm:$0xff] %v712
    // Predicated region
    $region30: #{feed_forward.1} parent=1 // pred_check
      _
    $region31: #{feed_forward.1} parent=1 // pred_check_branch
      %718 = sbr.rel (0) target = $region33
    $region32: #{feed_forward.1} parent=1 // pred_region
      %s720 = ssub.s32 256, 256
      %721 = vsyncadd [#allocation4], %s720
      %s722 = sshll.u32 [#allocation7], 4
      %s723 = int_to_ptr.vmem [resolvable:$true] %s722
      %728 = dma.vmem_to_hbm [thread:$0]  %s723, 256, %s5, [#allocation4], 128, 128, 8
    $region33: #{feed_forward.1} parent=1 // pred_fallthru
      _
    // Predicated region
    $region34: #{feed_forward.1} parent=1 // pred_check
      _
    $region35: #{feed_forward.1} parent=1 // pred_check_branch
      %730 = sbr.rel (0) target = $region37
    $region36: #{feed_forward.1} parent=1 // pred_region
      %731 = dma.done [#allocation4], 256
    $region37: #{feed_forward.1} parent=1 // pred_fallthru
      _
    %732 = vsyncpa [#allocation3], 1
    %733 = vsyncpa [#allocation6], 1
    %734 = vsyncpa [#allocation4], 1

</llo_original>
